<compile_context>
chip_gen: v5e
topology: v5e:2x2
jax: 0.10.0
libtpu: 0.0.40
codegen_flags: <defaults>
</compile_context>

<pallas_src>
import functools
import math

import jax
import jax.numpy as jnp
from jax.experimental import pallas as pl
from jax.experimental.pallas import tpu as pltpu


def _cdiv(a, b):
    return (a + b - 1) // b


def _round_up(n, m):
    return _cdiv(n, m) * m


def naive_bayes_kernel(x_ref, w_ref, b_ref, o_ref, acc_ref, *, rem_v, compute_dtype):
    k = pl.program_id(1)
    nk = pl.num_programs(1)

    @pl.when(k == 0)
    def _init():
        acc_ref[...] = jnp.zeros_like(acc_ref)

    x_tile = x_ref[...]
    if rem_v:
        # The last vocab tile window extends past the real columns; the
        # out-of-bounds lanes are undefined, so zero them before the MXU.
        col = jax.lax.broadcasted_iota(jnp.int32, x_tile.shape, 1)
        limit = jnp.where(k == nk - 1, rem_v, x_tile.shape[1])
        x_tile = jnp.where(col < limit, x_tile, 0.0)

    acc_ref[...] += jnp.dot(
        x_tile.astype(compute_dtype),
        w_ref[...].astype(compute_dtype),
        preferred_element_type=jnp.float32,
    )

    @pl.when(k == nk - 1)
    def _finalize():
        logits = acc_ref[...] + b_ref[...]        # (tb, 2), f32
        d = logits[:, 1:2] - logits[:, 0:1]       # l1 - l0
        # 2-class log-softmax via stable softplus: no cross-lane reduction.
        sp = jnp.maximum(d, 0.0) + jnp.log(1.0 + jnp.exp(-jnp.abs(d)))
        o_ref[:, 0:1] = (-sp).astype(o_ref.dtype)       # log p(class 0)
        o_ref[:, 1:2] = (d - sp).astype(o_ref.dtype)    # log p(class 1)


def naive_bayes_forward(x, w, b, *, tb_max=512, tk_max=4096,
                        compute_dtype=jnp.bfloat16):
    """x: (B, ...) -> flattened (B, V); w: (V, 2) (= nn.Linear.weight.T); b: (2,).

    Returns log-softmax logits of shape (B, 2) in float32.
    """
    batch = x.shape[0]
    x_flat = x.reshape(batch, -1)                 # x.view(x.size(0), -1)
    if x_flat.dtype != jnp.float32:
        x_flat = x_flat.astype(jnp.float32)
    vocab = x_flat.shape[1]

    # ---- tile selection: batch on sublanes (x8), vocab on lanes (x128) ------
    tb = min(tb_max, _round_up(batch, 8))
    if _cdiv(batch, tb) < 2 and tb > 8:
        # Guarantee >= 2 batch tiles so the "parallel" axis can be sharded
        # across v7x's two TensorCores (harmless on single-TC v5e/v6e).
        tb = _round_up(_cdiv(tb, 2), 8)
    nb = _cdiv(batch, tb)

    tk = min(tk_max, _round_up(vocab, 128))
    nk = _cdiv(vocab, tk)
    v_pad = nk * tk
    rem_v = vocab % tk                             # 0 -> no masking needed

    # ---- small operands ------------------------------------------------------
    # Weights stay lane-un-padded (Mosaic pads in VMEM); only the vocab
    # (reduction) axis is zero-padded so padded rows contribute nothing.
    w_p = w.astype(jnp.float32)
    if v_pad != vocab:
        w_p = jnp.zeros((v_pad, 2), jnp.float32).at[:vocab, :].set(w_p)
    b_row = b.astype(jnp.float32).reshape(1, 2)

    kernel = functools.partial(
        naive_bayes_kernel, rem_v=rem_v, compute_dtype=compute_dtype)

    out = pl.pallas_call(
        kernel,
        out_shape=jax.ShapeDtypeStruct((batch, 2), jnp.float32),
        grid_spec=pltpu.PrefetchScalarGridSpec(
            num_scalar_prefetch=0,
            grid=(nb, nk),                         # batch parallel, vocab reduction last
            in_specs=[
                pl.BlockSpec((tb, tk), lambda i, k: (i, k)),   # x tile (f32, streamed)
                pl.BlockSpec((tk, 2), lambda i, k: (k, 0)),    # W (lane dim = full extent)
                pl.BlockSpec((1, 2), lambda i, k: (0, 0)),     # bias (resident)
            ],
            out_specs=pl.BlockSpec((tb, 2), lambda i, k: (i, 0)),
            scratch_shapes=[pltpu.VMEM((tb, 2), jnp.float32)],
        ),
        compiler_params=pltpu.CompilerParams(
            dimension_semantics=("parallel", "arbitrary"),
            vmem_limit_bytes=48 * 1024 * 1024,
        ),
        cost_estimate=pl.CostEstimate(
            flops=2 * batch * vocab * 2,
            transcendentals=2 * batch,
            bytes_accessed=(batch * vocab * 4      # x read once, f32
                            + nb * v_pad * 2 * 4   # W re-streamed per batch tile
                            + 8                    # bias
                            + batch * 2 * 4),      # output
        ),
    )(x_flat, w_p, b_row)

    return out


if __name__ == "__main__":
    batch = 20
    vocab_size = 400  # stand-in for len(TEXT.vocab)

    key = jax.random.PRNGKey(0)
    kx, kw, kb = jax.random.split(key, 3)

    # Bag-of-words style non-negative counts as input (B, vocab_size)
    x = jax.random.randint(kx, (batch, vocab_size), 0, 3).astype(jnp.float32)

    # Deterministic nn.Linear(vocab_size, 2) init: U(-1/sqrt(V), 1/sqrt(V))
    bound = 1.0 / math.sqrt(vocab_size)
    w = jax.random.uniform(kw, (vocab_size, 2), jnp.float32, -bound, bound)
    b = jax.random.uniform(kb, (2,), jnp.float32, -bound, bound)

    # Reference built from the same bf16-rounded MXU operands (integer counts
    # <= 256 are exact in bf16); accumulation is f32 on both sides.
    xw = (
        x.astype(jnp.bfloat16).astype(jnp.float32)
        @ w.astype(jnp.bfloat16).astype(jnp.float32)
    ) + b
    ref = jax.nn.log_softmax(xw, axis=-1)

    # 1) Default tiles: batch 20 -> two 16-row tiles (v7x megacore), vocab in a
    #    single masked 512-lane tile (rem=400).
    out = naive_bayes_forward(x, w, b)
    jax.block_until_ready(out)
    assert out.shape == (batch, 2)
    assert jnp.allclose(out, ref, atol=1e-4), "mismatch vs reference (default tiles)"

    # 2) Small forced tiles to exercise the full multi-step (batch, vocab) grid:
    #    3 batch tiles of 8 rows, 4 vocab tiles of 128 lanes (last tile rem=16).
    out_tiled = naive_bayes_forward(x, w, b, tb_max=8, tk_max=128)
    jax.block_until_ready(out_tiled)
    assert jnp.allclose(out_tiled, ref, atol=1e-4), "mismatch vs reference (tiled)"

    print("KERNEL_OK")
</pallas_src>

<mosaic_0001>
module attributes {stable_mosaic.version = 11 : i64} {
  func.func @naive_bayes_kernel(%arg0: i32, %arg1: i32, %arg2: memref<16x512xf32, #tpu.memory_space<vmem>>, %arg3: memref<512x2xf32, #tpu.memory_space<vmem>>, %arg4: memref<1x2xf32, #tpu.memory_space<vmem>>, %arg5: memref<16x2xf32, #tpu.memory_space<vmem>>, %arg6: memref<16x2xf32, #tpu.memory_space<vmem>>) attributes {dimension_semantics = [#tpu.dimension_semantics<parallel>, #tpu.dimension_semantics<arbitrary>], iteration_bounds = array<i64: 2, 1>, scalar_prefetch = 0 : i64, scratch_operands = 1 : i64, tpu.core_type = #tpu.core_type<tc>, window_params = [{transform_indices = @transform_0, window_bounds = array<i64: 16, 512>}, {transform_indices = @transform_1, window_bounds = array<i64: 512, 2>}, {pipeline_mode = #tpu.pipeline_mode<synchronous>, transform_indices = @transform_2, window_bounds = array<i64: 1, 2>}, {transform_indices = @transform_3, window_bounds = array<i64: 16, 2>}]} {
    %c0_i32 = arith.constant 0 : i32
    %0 = arith.cmpi eq, %arg1, %c0_i32 : i32
    %1 = arith.extui %0 : i1 to i32
    %c0_i32_0 = arith.constant 0 : i32
    %2 = arith.cmpi ne, %1, %c0_i32_0 : i32
    scf.if %2 {
      %cst_12 = arith.constant 0.000000e+00 : f32
      %21 = vector.broadcast %cst_12 : f32 to vector<16x2xf32>
      %c0_13 = arith.constant 0 : index
      %c0_14 = arith.constant 0 : index
      %22 = vector.load %arg6[%c0_13, %c0_14] : memref<16x2xf32, #tpu.memory_space<vmem>>, vector<16x2xf32>
      tpu.vector_store %arg6[%c0_13, %c0_14], %21 {strides = array<i32>} : memref<16x2xf32, #tpu.memory_space<vmem>>, vector<16x2xf32>,
    } else {
    }
    %c0 = arith.constant 0 : index
    %c0_1 = arith.constant 0 : index
    %3 = vector.load %arg2[%c0, %c0_1] : memref<16x512xf32, #tpu.memory_space<vmem>>, vector<16x512xf32>
    %4 = tpu.iota {dimensions = array<i32: 1>} : vector<16x512xi32>
    %c0_i32_2 = arith.constant 0 : i32
    %5 = arith.cmpi eq, %arg1, %c0_i32_2 : i32
    %c400_i32 = arith.constant 400 : i32
    %c512_i32 = arith.constant 512 : i32
    %6 = arith.select %5, %c400_i32, %c512_i32 : i32
    %7 = vector.broadcast %6 : i32 to vector<16x512xi32>
    %8 = arith.cmpi slt, %4, %7 : vector<16x512xi32>
    %cst = arith.constant 0.000000e+00 : f32
    %9 = vector.broadcast %cst : f32 to vector<16x512xf32>
    %10 = arith.select %8, %3, %9 : vector<16x512xi1>, vector<16x512xf32>
    %c0_3 = arith.constant 0 : index
    %c0_4 = arith.constant 0 : index
    %11 = vector.load %arg6[%c0_3, %c0_4] : memref<16x2xf32, #tpu.memory_space<vmem>>, vector<16x2xf32>
    %12 = arith.truncf %10 : vector<16x512xf32> to vector<16x512xbf16>
    %c0_5 = arith.constant 0 : index
    %c0_6 = arith.constant 0 : index
    %13 = vector.load %arg3[%c0_5, %c0_6] : memref<512x2xf32, #tpu.memory_space<vmem>>, vector<512x2xf32>
    %14 = arith.truncf %13 : vector<512x2xf32> to vector<512x2xbf16>
    %cst_7 = arith.constant dense<0.000000e+00> : vector<16x2xf32>
    %15 = tpu.matmul %12, %14, %cst_7 {dimension_numbers = #tpu.dot_dimension_numbers<[1], [0], [0], [1], [0, 0, 1, 1], [], []>} : vector<16x512xbf16>, vector<512x2xbf16>, vector<16x2xf32> -> vector<16x2xf32>
    %16 = arith.addf %11, %15 : vector<16x2xf32>
    %c0_8 = arith.constant 0 : index
    %c0_9 = arith.constant 0 : index
    %17 = vector.load %arg6[%c0_8, %c0_9] : memref<16x2xf32, #tpu.memory_space<vmem>>, vector<16x2xf32>
    tpu.vector_store %arg6[%c0_8, %c0_9], %16 {strides = array<i32>} : memref<16x2xf32, #tpu.memory_space<vmem>>, vector<16x2xf32>,
    %c0_i32_10 = arith.constant 0 : i32
    %18 = arith.cmpi eq, %arg1, %c0_i32_10 : i32
    %19 = arith.extui %18 : i1 to i32
    %c0_i32_11 = arith.constant 0 : i32
    %20 = arith.cmpi ne, %19, %c0_i32_11 : i32
    scf.if %20 {
      %c0_12 = arith.constant 0 : index
      %c0_13 = arith.constant 0 : index
      %21 = vector.load %arg6[%c0_12, %c0_13] : memref<16x2xf32, #tpu.memory_space<vmem>>, vector<16x2xf32>
      %c0_14 = arith.constant 0 : index
      %c0_15 = arith.constant 0 : index
      %22 = vector.load %arg4[%c0_14, %c0_15] : memref<1x2xf32, #tpu.memory_space<vmem>>, vector<1x2xf32>
      %23 = vector.broadcast %22 : vector<1x2xf32> to vector<16x2xf32>
      %24 = arith.addf %21, %23 : vector<16x2xf32>
      %25 = vector.extract_strided_slice %24 {offsets = [0, 1], sizes = [16, 1], strides = [1, 1]} : vector<16x2xf32> to vector<16x1xf32>
      %26 = vector.extract_strided_slice %24 {offsets = [0, 0], sizes = [16, 1], strides = [1, 1]} : vector<16x2xf32> to vector<16x1xf32>
      %27 = arith.subf %25, %26 : vector<16x1xf32>
      %cst_16 = arith.constant 0.000000e+00 : f32
      %28 = vector.broadcast %cst_16 : f32 to vector<16x1xf32>
      %29 = arith.maximumf %27, %28 : vector<16x1xf32>
      %30 = math.absf %27 : vector<16x1xf32>
      %cst_17 = arith.constant 0.000000e+00 : f32
      %31 = vector.broadcast %cst_17 : f32 to vector<16x1xf32>
      %32 = arith.subf %31, %30 : vector<16x1xf32>
      %33 = math.exp %32 : vector<16x1xf32>
      %cst_18 = arith.constant 1.000000e+00 : f32
      %34 = vector.broadcast %cst_18 : f32 to vector<16x1xf32>
      %35 = arith.addf %34, %33 : vector<16x1xf32>
      %36 = math.log %35 : vector<16x1xf32>
      %37 = arith.addf %29, %36 : vector<16x1xf32>
      %cst_19 = arith.constant 0.000000e+00 : f32
      %38 = vector.broadcast %cst_19 : f32 to vector<16x1xf32>
      %39 = arith.subf %38, %37 : vector<16x1xf32>
      %c0_20 = arith.constant 0 : index
      %c0_21 = arith.constant 0 : index
      %40 = vector.load %arg5[%c0_20, %c0_21] : memref<16x2xf32, #tpu.memory_space<vmem>>, vector<16x1xf32>
      tpu.vector_store %arg5[%c0_20, %c0_21], %39 {strides = array<i32>} : memref<16x2xf32, #tpu.memory_space<vmem>>, vector<16x1xf32>,
      %41 = arith.subf %27, %37 : vector<16x1xf32>
      %c0_22 = arith.constant 0 : index
      %c1 = arith.constant 1 : index
      %42 = vector.load %arg5[%c0_22, %c1] : memref<16x2xf32, #tpu.memory_space<vmem>>, vector<16x1xf32>
      tpu.vector_store %arg5[%c0_22, %c1], %41 {strides = array<i32>} : memref<16x2xf32, #tpu.memory_space<vmem>>, vector<16x1xf32>,
    } else {
    }
    return
  }
  func.func @transform_0(%arg0: i32, %arg1: i32) -> (i32, i32) {
    %c0_i32 = arith.constant 0 : i32
    return %arg0, %arg1 : i32, i32
  }
  func.func @transform_1(%arg0: i32, %arg1: i32) -> (i32, i32) {
    %c0_i32 = arith.constant 0 : i32
    %c0_i32_0 = arith.constant 0 : i32
    return %arg1, %c0_i32 : i32, i32
  }
  func.func @transform_2(%arg0: i32, %arg1: i32) -> (i32, i32) {
    %c0_i32 = arith.constant 0 : i32
    %c0_i32_0 = arith.constant 0 : i32
    %c0_i32_1 = arith.constant 0 : i32
    return %c0_i32, %c0_i32_0 : i32, i32
  }
  func.func @transform_3(%arg0: i32, %arg1: i32) -> (i32, i32) {
    %c0_i32 = arith.constant 0 : i32
    %c0_i32_0 = arith.constant 0 : i32
    return %arg0, %c0_i32 : i32, i32
  }
}

</mosaic_0001>

<llo_original>
// kernel: tpu_custom_call.1
$region0: #{tpu_custom_call.1}
  #allocation0 [shape = 'u32[]', space=smem, size = 0x4, offset = 0x4, fixed_abs, tag = 'smem constant byte address 0x4 - core index']
  #allocation1 [shape = 'u32[72,128]{1,0:T(1,128)}', space=vmem, size = 0x9000, scoped, tag = 'internal scratch']
  #allocation2 [shape = 'f32[16,2]{1,0:T(8,128)}', space=vmem, size = 0x2000, scoped, tag = 'scratch operand']
  %s0 = inlined_call_operand.vmem [shape: f32[20,400], index: 0, kind: input, shape index: {}]
  %s1 = inlined_call_operand.vmem [shape: f32[512,2], index: 1, kind: input, shape index: {}]
  %s2 = inlined_call_operand.vmem [shape: f32[1,2], index: 2, kind: input, shape index: {}]
  %s3 = inlined_call_operand.vmem [shape: f32[20,2], index: 3, kind: output, shape index: {}]
  %s4 = sld [smem:[#allocation0]]
  $region101: #{tpu_custom_call.1} parent=0
    _
  %s6 = ssub.s32 1, %s4
  %s7 = scalar_select 0, %s6, %s4
  $region1: #{tpu_custom_call.1} parent=0
    #allocation3 [shape = 'u8[16384]{0}', space=vmem, size = 0x4000, scoped, tag = 'output window, operand 0']
    loop: start=0, step=1, limit=4
    $region2: #{tpu_custom_call.1} parent=1 // loop_pre_header
      _
    $region3: #{tpu_custom_call.1} parent=1 // loop_header
      %s9 = sphi 0, %s13
      %p10 = scmp.ge.s32.totalorder %s9, 4
      %s16 = sphi 0, %s28
      %s17 = sphi 0, %s24
      %s18 = sphi 0, %s16
      %s19 = sphi 0, %s17
      %s20 = sphi 0, %s18
      %s21 = sphi 0, %s19
      %s33 = sphi 0, %s35
      %s36 = sphi 0, %s33
      %s37 = sphi 0, %s36
      %s53 = sphi 0, %s37
      %s59 = sphi 0, %s61
      %s62 = sphi 0, %s59
      %s63 = sphi 0, %s62
      %s79 = sphi 0, %s63
      %s83 = sphi 0, %s83
      %s85 = sphi 0, %s83
      %s86 = sphi 0, %s85
      %s100 = sphi 0, %s86
      %s106 = sphi 0, %s108
      %s109 = sphi 0, %s106
      %s110 = sphi 0, %s109
      %s126 = sphi 0, %s110
    $region4: #{tpu_custom_call.1} parent=1 // loop_header_branch
      %12 = sbr.rel (%p10) target = $region8
    $region5: #{tpu_custom_call.1} parent=1 // loop_body
      %s14 = ssub.s32 %s9, 1
      %s15 = ssub.s32 %s9, 2
      %s22 = sadd.s32 1, %s17
      %p23 = scmp.ge.s32.totalorder %s22, 1
      %s24 = scalar_select %p23, 0, %s22
      %s25 = sadd.s32 1, %s16
      %s26 = scalar_select %p23, %s25, %s16
      %p27 = scmp.ge.s32.totalorder %s26, 2
      %s28 = scalar_select %p27, 0, %s26
      %s29 = ssub.s32 %s16, %s28
      %s30 = ssub.s32 %s17, %s24
      %s31 = sor.u32 %s29, %s30
      %p32 = scmp.eq.s32.totalorder %s31, 0
      %s34 = sadd.s32 %s33, 1
      %s35 = scalar_select %p32, %s33, %s34
      %p38 = pneg %p32
      %p39 = scmp.eq.s32.totalorder %s9, 1
      %p40 = por %p38, %p39
      %p41 = scmp.ne.s32.totalorder %s33, %s36
      %p42 = scmp.eq.s32.totalorder %s9, 0
      %p43 = por %p41, %p42
      %p44 = scmp.ne.s32.totalorder %s33, %s36
      %p45 = scmp.eq.s32.totalorder %s14, 1
      %p46 = por %p44, %p45
      %p47 = scmp.ne.s32.totalorder %s36, %s37
      %p48 = scmp.eq.s32.totalorder %s14, 0
      %p49 = por %p47, %p48
      %p50 = scmp.ne.s32.totalorder %s36, %s37
      %p51 = scmp.eq.s32.totalorder %s15, 1
      %p52 = por %p50, %p51
      %p54 = scmp.ne.s32.totalorder %s37, %s53
      %p55 = scmp.eq.s32.totalorder %s15, 0
      %p56 = por %p54, %p55
      %s57 = ssub.s32 %s17, %s24
      %p58 = scmp.eq.s32.totalorder %s57, 0
      %s60 = sadd.s32 %s59, 1
      %s61 = scalar_select %p58, %s59, %s60
      %p64 = pneg %p58
      %p65 = scmp.eq.s32.totalorder %s9, 1
      %p66 = por %p64, %p65
      %p67 = scmp.ne.s32.totalorder %s59, %s62
      %p68 = scmp.eq.s32.totalorder %s9, 0
      %p69 = por %p67, %p68
      %p70 = scmp.ne.s32.totalorder %s59, %s62
      %p71 = scmp.eq.s32.totalorder %s14, 1
      %p72 = por %p70, %p71
      %p73 = scmp.ne.s32.totalorder %s62, %s63
      %p74 = scmp.eq.s32.totalorder %s14, 0
      %p75 = por %p73, %p74
      %p76 = scmp.ne.s32.totalorder %s62, %s63
      %p77 = scmp.eq.s32.totalorder %s15, 1
      %p78 = por %p76, %p77
      %p80 = scmp.ne.s32.totalorder %s63, %s79
      %p81 = scmp.eq.s32.totalorder %s15, 0
      %p82 = por %p80, %p81
      %s84 = sadd.s32 %s83, 1
      %p87 = scmp.eq.s32.totalorder %s9, 1
      %p88 = scmp.ne.s32.totalorder %s83, %s85
      %p89 = scmp.eq.s32.totalorder %s9, 0
      %p90 = por %p88, %p89
      %p91 = scmp.ne.s32.totalorder %s83, %s85
      %p92 = scmp.eq.s32.totalorder %s14, 1
      %p93 = por %p91, %p92
      %p94 = scmp.ne.s32.totalorder %s85, %s86
      %p95 = scmp.eq.s32.totalorder %s14, 0
      %p96 = por %p94, %p95
      %p97 = scmp.ne.s32.totalorder %s85, %s86
      %p98 = scmp.eq.s32.totalorder %s15, 1
      %p99 = por %p97, %p98
      %p101 = scmp.ne.s32.totalorder %s86, %s100
      %p102 = scmp.eq.s32.totalorder %s15, 0
      %p103 = por %p101, %p102
      %s104 = ssub.s32 %s16, %s28
      %p105 = scmp.eq.s32.totalorder %s104, 0
      %s107 = sadd.s32 %s106, 1
      %s108 = scalar_select %p105, %s106, %s107
      %p111 = pneg %p105
      %p112 = scmp.eq.s32.totalorder %s9, 1
      %p113 = por %p111, %p112
      %p114 = scmp.ne.s32.totalorder %s106, %s109
      %p115 = scmp.eq.s32.totalorder %s9, 0
      %p116 = por %p114, %p115
      %p117 = scmp.ne.s32.totalorder %s106, %s109
      %p118 = scmp.eq.s32.totalorder %s14, 1
      %p119 = por %p117, %p118
      %p120 = scmp.ne.s32.totalorder %s109, %s110
      %p121 = scmp.eq.s32.totalorder %s14, 0
      %p122 = por %p120, %p121
      %p123 = scmp.ne.s32.totalorder %s109, %s110
      %p124 = scmp.eq.s32.totalorder %s15, 1
      %p125 = por %p123, %p124
      %p127 = scmp.ne.s32.totalorder %s110, %s126
      %p128 = scmp.eq.s32.totalorder %s15, 0
      %p129 = por %p127, %p128
      %p130 = scmp.le.s32.totalorder 1, %s9
      %p131 = scmp.lt.s32.totalorder %s9, 3
      %p132 = pnand %p130, %p131
      %p133 = pneg %p132
      // Predicated region
      $region9: #{tpu_custom_call.1} parent=5 // pred_check
        _
      $region10: #{tpu_custom_call.1} parent=5 // pred_check_branch
        %135 = sbr.rel (%p132) target = $region12
      $region11: #{tpu_custom_call.1} parent=5 // pred_region
        %s136 = ssub.s32 %s9, 1
        // Predicated region
        $region13: #{tpu_custom_call.1} parent=11 // pred_check
          %p137 = pneg %p75
        $region14: #{tpu_custom_call.1} parent=11 // pred_check_branch
          %139 = sbr.rel (%p137) target = $region16
        $region15: #{tpu_custom_call.1} parent=11 // pred_region
          %s140 = smul.u32 64, %s19
          %p141 = scmp.lt.s32.totalorder %s140, 63
          %s142 = scalar_select %p141, %s140, 63
          %s143 = smul.addr %s142, 8
          %s144 = scalar_lea.vmem %s1, %s143
          %s145 = smul.u32 64, %s19
        $region16: #{tpu_custom_call.1} parent=11 // pred_fallthru
          _
        // Predicated region
        $region17: #{tpu_custom_call.1} parent=11 // pred_check
          %p146 = pneg %p96
        $region18: #{tpu_custom_call.1} parent=11 // pred_check_branch
          %148 = sbr.rel (%p146) target = $region20
        $region19: #{tpu_custom_call.1} parent=11 // pred_region
          _
        $region20: #{tpu_custom_call.1} parent=11 // pred_fallthru
          _
      $region12: #{tpu_custom_call.1} parent=5 // pred_fallthru
        _
      %p149 = scmp.lt.s32.totalorder %s9, 2
      // Predicated region
      $region21: #{tpu_custom_call.1} parent=5 // pred_check
        %p150 = pneg %p149
      $region22: #{tpu_custom_call.1} parent=5 // pred_check_branch
        %152 = sbr.rel (%p150) target = $region24
      $region23: #{tpu_custom_call.1} parent=5 // pred_region
        // Predicated region
        $region25: #{tpu_custom_call.1} parent=23 // pred_check
          %p153 = pneg %p43
        $region26: #{tpu_custom_call.1} parent=23 // pred_check_branch
          %155 = sbr.rel (%p153) target = $region28
        $region27: #{tpu_custom_call.1} parent=23 // pred_region
          %s156 = smul.u32 2, %s16
          %s157 = smul.u32 4, %s17
          %s158 = ssub.s32 3, %s156
          %p159 = scmp.lt.s32.totalorder %s158, 2
          %s160 = scalar_select %p159, %s158, 2
          %s161 = smul.u32 8, %s160
          %s162 = smul.u32 %s161, 4
          %p163 = scmp.lt.s32.totalorder %s156, 2
          %s164 = scalar_select %p163, %s156, 2
          %p165 = scmp.lt.s32.totalorder %s157, 3
          %s166 = scalar_select %p165, %s157, 3
          %s167 = smul.addr %s164, 4
          %s168 = sadd.s32 %s166, %s167
          %s169 = smul.addr %s168, 8
          %s170 = scalar_lea.vmem %s0, %s169
          %s171 = smul.u32 2, %s16
          %s172 = smul.u32 4, %s17
          %s173 = ssub.s32 3, %s171
          %p174 = scmp.lt.s32.totalorder %s173, 2
          %s175 = scalar_select %p174, %s173, 2
          %s176 = smul.u32 8, %s175
          %s177 = smul.u32 %s176, 4
        $region28: #{tpu_custom_call.1} parent=23 // pred_fallthru
          _
      $region24: #{tpu_custom_call.1} parent=5 // pred_fallthru
        _
      %p178 = scmp.le.s32.totalorder 1, %s9
      %p179 = scmp.lt.s32.totalorder %s9, 3
      %p180 = pnand %p178, %p179
      %p181 = pneg %p180
      // Predicated region
      $region29: #{tpu_custom_call.1} parent=5 // pred_check
        _
      $region30: #{tpu_custom_call.1} parent=5 // pred_check_branch
        %183 = sbr.rel (%p180) target = $region32
      $region31: #{tpu_custom_call.1} parent=5 // pred_region
        %s184 = ssub.s32 %s9, 1
        %s185 = smul.u32 2, %s18
        %s186 = smul.u32 4, %s19
        %s187 = ssub.s32 3, %s185
        %p188 = scmp.lt.s32.totalorder %s187, 2
        %s189 = scalar_select %p188, %s187, 2
        %s190 = smul.u32 8, %s189
        %s191 = smul.u32 %s190, 4
        %p192 = scmp.lt.s32.totalorder %s185, 2
        %s193 = scalar_select %p192, %s185, 2
        %p194 = scmp.lt.s32.totalorder %s186, 3
        %s195 = scalar_select %p194, %s186, 3
        %s196 = smul.addr %s193, 4
        %s197 = sadd.s32 %s195, %s196
        %s198 = smul.addr %s197, 8
        %s199 = scalar_lea.vmem %s0, %s198
        %p200 = pneg %p49
        %p201 = pneg %p46
        %s202 = smul.u32 64, %s19
        %p203 = scmp.lt.s32.totalorder %s202, 63
        %s204 = scalar_select %p203, %s202, 63
        %s205 = smul.addr %s204, 8
        %s206 = scalar_lea.vmem %s1, %s205
        %p207 = pneg %p75
        %p208 = pneg %p72
        %p209 = pneg %p96
        %p210 = pneg %p93
        %p211 = pneg %p122
        %p212 = pneg %p119
        %s213 = sand.u32 %s109, 1
        %s214 = sand.u32 %s109, 1
        %s215 = smul.addr %s214, 16
        %s216 = scalar_lea.vmem [#allocation3], %s215
        %s217 = smul.u32 2, %s18
        %s218 = smul.u32 4, %s19
        %s219 = ssub.s32 3, %s217
        %p220 = scmp.lt.s32.totalorder %s219, 2
        %s221 = scalar_select %p220, %s219, 2
        %s222 = smul.u32 8, %s221
        %s223 = smul.u32 %s222, 4
        %p224 = scmp.lt.s32.totalorder %s217, 2
        %s225 = scalar_select %p224, %s217, 2
        %p226 = scmp.lt.s32.totalorder %s218, 3
        %s227 = scalar_select %p226, %s218, 3
        %s228 = smul.addr %s225, 4
        %s229 = sadd.s32 %s227, %s228
        %s230 = smul.addr %s229, 8
        %s231 = scalar_lea.vmem %s0, %s230
        %s232 = smul.u32 2, %s18
        %s233 = smul.u32 4, %s19
        %s234 = ssub.s32 3, %s232
        %p235 = scmp.lt.s32.totalorder %s234, 2
        %s236 = scalar_select %p235, %s234, 2
        %s237 = smul.u32 8, %s236
        %s238 = smul.u32 %s237, 4
        %s239 = smul.u32 64, %s19
        %p240 = scmp.lt.s32.totalorder %s239, 63
        %s241 = scalar_select %p240, %s239, 63
        %s242 = smul.addr %s241, 8
        %s243 = scalar_lea.vmem %s1, %s242
        %s244 = smul.u32 64, %s19
        %s245 = smul.u32 2, %s18
        %s246 = ssub.s32 3, %s245
        %p247 = scmp.lt.s32.totalorder %s246, 2
        %s248 = scalar_select %p247, %s246, 2
        %s249 = smul.u32 8, %s248
        %p250 = scmp.eq.s32.totalorder %s19, 0
        // Predicated region
        $region33: #{tpu_custom_call.1} parent=31 // pred_check
          %p251 = pneg %p250
        $region34: #{tpu_custom_call.1} parent=31 // pred_check_branch
          %253 = sbr.rel (%p251) target = $region36
        $region35: #{tpu_custom_call.1} parent=31 // pred_region
          %vm254 = vcmask 15360
          %255 = vst.msk [vmem:[#allocation2] sm:$0xff] %vm254, 0.0
          %256 = vst.msk [vmem:[#allocation2 + $0x8] sm:$0xff] %vm254, 0.0
        $region36: #{tpu_custom_call.1} parent=31 // pred_fallthru
          _
        %v257 = vld [vmem:[%s231] sm:$0xff]
        %v258 = vld [vmem:[%s231 + $0x8] sm:$0xff]
        %v259 = vld [vmem:[%s231 + $0x10] sm:$0xff]
        %v260 = vld [vmem:[%s231 + $0x18] sm:$0xff]
        %v261 = vld [vmem:[%s231 + $0x20] sm:$0xff]
        %v262 = vld [vmem:[%s231 + $0x28] sm:$0xff]
        %v263 = vld [vmem:[%s231 + $0x30] sm:$0xff]
        %v264 = vld [vmem:[%s231 + $0x38] sm:$0xff]
        %v265 = vlaneseq
        %v266 = vand.u32 %v265, 127
        %v267 = vadd.s32 %v266, 128
        %v268 = vadd.s32 %v266, 256
        %v269 = vadd.s32 %v266, 384
        %s270 = scalar_select %p250, 400, 512
        %v271 = vstv %s270
        %vm272 = vcmp.lt.s32.totalorder %v266, %v271
        %vm273 = vcmp.lt.s32.totalorder %v267, %v271
        %vm274 = vcmp.lt.s32.totalorder %v268, %v271
        %vm275 = vcmp.lt.s32.totalorder %v269, %v271
        %v276 = vsel %vm272, %v257, 0.0
        %v277 = vsel %vm273, %v258, 0.0
        %v278 = vsel %vm274, %v259, 0.0
        %v279 = vsel %vm275, %v260, 0.0
        %v280 = vsel %vm272, %v261, 0.0
        %v281 = vsel %vm273, %v262, 0.0
        %v282 = vsel %vm274, %v263, 0.0
        %v283 = vsel %vm275, %v264, 0.0
        %v284 = vld [vmem:[#allocation2] sm:$0xff]
        %v285 = vld [vmem:[#allocation2 + $0x8] sm:$0xff]
        %v286 = vpack.c.bf16 %v280, %v276
        %v287 = vpack.c.bf16 %v281, %v277
        %v288 = vpack.c.bf16 %v282, %v278
        %v289 = vpack.c.bf16 %v283, %v279
        %v290 = vld [vmem:[%s243] sm:$0xff]
        %v291 = vld [vmem:[%s243 + $0x8] sm:$0xff]
        %v292 = vld [vmem:[%s243 + $0x10] sm:$0xff]
        %v293 = vld [vmem:[%s243 + $0x18] sm:$0xff]
        %v294 = vld [vmem:[%s243 + $0x20] sm:$0xff]
        %v295 = vld [vmem:[%s243 + $0x28] sm:$0xff]
        %v296 = vld [vmem:[%s243 + $0x30] sm:$0xff]
        %v297 = vld [vmem:[%s243 + $0x38] sm:$0xff]
        %v298 = vld [vmem:[%s243 + $0x40] sm:$0xff]
        %v299 = vld [vmem:[%s243 + $0x48] sm:$0xff]
        %v300 = vld [vmem:[%s243 + $0x50] sm:$0xff]
        %v301 = vld [vmem:[%s243 + $0x58] sm:$0xff]
        %v302 = vld [vmem:[%s243 + $0x60] sm:$0xff]
        %v303 = vld [vmem:[%s243 + $0x68] sm:$0xff]
        %v304 = vld [vmem:[%s243 + $0x70] sm:$0xff]
        %v305 = vld [vmem:[%s243 + $0x78] sm:$0xff]
        %v306 = vld [vmem:[%s243 + $0x80] sm:$0xff]
        %v307 = vld [vmem:[%s243 + $0x88] sm:$0xff]
        %v308 = vld [vmem:[%s243 + $0x90] sm:$0xff]
        %v309 = vld [vmem:[%s243 + $0x98] sm:$0xff]
        %v310 = vld [vmem:[%s243 + $0xa0] sm:$0xff]
        %v311 = vld [vmem:[%s243 + $0xa8] sm:$0xff]
        %v312 = vld [vmem:[%s243 + $0xb0] sm:$0xff]
        %v313 = vld [vmem:[%s243 + $0xb8] sm:$0xff]
        %v314 = vld [vmem:[%s243 + $0xc0] sm:$0xff]
        %v315 = vld [vmem:[%s243 + $0xc8] sm:$0xff]
        %v316 = vld [vmem:[%s243 + $0xd0] sm:$0xff]
        %v317 = vld [vmem:[%s243 + $0xd8] sm:$0xff]
        %v318 = vld [vmem:[%s243 + $0xe0] sm:$0xff]
        %v319 = vld [vmem:[%s243 + $0xe8] sm:$0xff]
        %v320 = vld [vmem:[%s243 + $0xf0] sm:$0xff]
        %v321 = vld [vmem:[%s243 + $0xf8] sm:$0xff]
        %v322 = vld [vmem:[%s243 + $0x100] sm:$0xff]
        %v323 = vld [vmem:[%s243 + $0x108] sm:$0xff]
        %v324 = vld [vmem:[%s243 + $0x110] sm:$0xff]
        %v325 = vld [vmem:[%s243 + $0x118] sm:$0xff]
        %v326 = vld [vmem:[%s243 + $0x120] sm:$0xff]
        %v327 = vld [vmem:[%s243 + $0x128] sm:$0xff]
        %v328 = vld [vmem:[%s243 + $0x130] sm:$0xff]
        %v329 = vld [vmem:[%s243 + $0x138] sm:$0xff]
        %v330 = vld [vmem:[%s243 + $0x140] sm:$0xff]
        %v331 = vld [vmem:[%s243 + $0x148] sm:$0xff]
        %v332 = vld [vmem:[%s243 + $0x150] sm:$0xff]
        %v333 = vld [vmem:[%s243 + $0x158] sm:$0xff]
        %v334 = vld [vmem:[%s243 + $0x160] sm:$0xff]
        %v335 = vld [vmem:[%s243 + $0x168] sm:$0xff]
        %v336 = vld [vmem:[%s243 + $0x170] sm:$0xff]
        %v337 = vld [vmem:[%s243 + $0x178] sm:$0xff]
        %v338 = vld [vmem:[%s243 + $0x180] sm:$0xff]
        %v339 = vld [vmem:[%s243 + $0x188] sm:$0xff]
        %v340 = vld [vmem:[%s243 + $0x190] sm:$0xff]
        %v341 = vld [vmem:[%s243 + $0x198] sm:$0xff]
        %v342 = vld [vmem:[%s243 + $0x1a0] sm:$0xff]
        %v343 = vld [vmem:[%s243 + $0x1a8] sm:$0xff]
        %v344 = vld [vmem:[%s243 + $0x1b0] sm:$0xff]
        %v345 = vld [vmem:[%s243 + $0x1b8] sm:$0xff]
        %v346 = vld [vmem:[%s243 + $0x1c0] sm:$0xff]
        %v347 = vld [vmem:[%s243 + $0x1c8] sm:$0xff]
        %v348 = vld [vmem:[%s243 + $0x1d0] sm:$0xff]
        %v349 = vld [vmem:[%s243 + $0x1d8] sm:$0xff]
        %v350 = vld [vmem:[%s243 + $0x1e0] sm:$0xff]
        %v351 = vld [vmem:[%s243 + $0x1e8] sm:$0xff]
        %v352 = vld [vmem:[%s243 + $0x1f0] sm:$0xff]
        %v353 = vld [vmem:[%s243 + $0x1f8] sm:$0xff]
        %v354 = vpack.c.bf16 %v291, %v290
        %v355 = vpack.c.bf16 %v293, %v292
        %v356 = vpack.c.bf16 %v295, %v294
        %v357 = vpack.c.bf16 %v297, %v296
        %v358 = vpack.c.bf16 %v299, %v298
        %v359 = vpack.c.bf16 %v301, %v300
        %v360 = vpack.c.bf16 %v303, %v302
        %v361 = vpack.c.bf16 %v305, %v304
        %v362 = vpack.c.bf16 %v307, %v306
        %v363 = vpack.c.bf16 %v309, %v308
        %v364 = vpack.c.bf16 %v311, %v310
        %v365 = vpack.c.bf16 %v313, %v312
        %v366 = vpack.c.bf16 %v315, %v314
        %v367 = vpack.c.bf16 %v317, %v316
        %v368 = vpack.c.bf16 %v319, %v318
        %v369 = vpack.c.bf16 %v321, %v320
        %v370 = vpack.c.bf16 %v323, %v322
        %v371 = vpack.c.bf16 %v325, %v324
        %v372 = vpack.c.bf16 %v327, %v326
        %v373 = vpack.c.bf16 %v329, %v328
        %v374 = vpack.c.bf16 %v331, %v330
        %v375 = vpack.c.bf16 %v333, %v332
        %v376 = vpack.c.bf16 %v335, %v334
        %v377 = vpack.c.bf16 %v337, %v336
        %v378 = vpack.c.bf16 %v339, %v338
        %v379 = vpack.c.bf16 %v341, %v340
        %v380 = vpack.c.bf16 %v343, %v342
        %v381 = vpack.c.bf16 %v345, %v344
        %v382 = vpack.c.bf16 %v347, %v346
        %v383 = vpack.c.bf16 %v349, %v348
        %v384 = vpack.c.bf16 %v351, %v350
        %v385 = vpack.c.bf16 %v353, %v352
        %386 = vmatpush.bf16.msra.mxu0 %v361
        %387 = vmatpush.bf16.msra.mxu0 %v360
        %388 = vmatpush.bf16.msra.mxu0 %v359
        %389 = vmatpush.bf16.msra.mxu0 %v358
        %390 = vmatpush.bf16.msra.mxu0 %v357
        %391 = vmatpush.bf16.msra.mxu0 %v356
        %392 = vmatpush.bf16.msra.mxu0 %v355
        %393 = vmatpush.bf16.msra.mxu0 %v354
        %394 = vmatmul.bf16.gmra.mxu0 %v286
        %v395 = vpop.f32.mrf.mxu0
        %v396 = vadd.f32 0.0, %v395
        %v397 = vpop.f32.mrf.mxu0
        %v398 = vadd.f32 0.0, %v397
        %399 = vdwg.mxu0
        %400 = vmatpush.bf16.msra.mxu0 %v369
        %401 = vmatpush.bf16.msra.mxu0 %v368
        %402 = vmatpush.bf16.msra.mxu0 %v367
        %403 = vmatpush.bf16.msra.mxu0 %v366
        %404 = vmatpush.bf16.msra.mxu0 %v365
        %405 = vmatpush.bf16.msra.mxu0 %v364
        %406 = vmatpush.bf16.msra.mxu0 %v363
        %407 = vmatpush.bf16.msra.mxu0 %v362
        %408 = vmatmul.bf16.gmra.mxu0 %v287
        %v409 = vpop.f32.mrf.mxu0
        %v410 = vadd.f32 %v396, %v409
        %v411 = vpop.f32.mrf.mxu0
        %v412 = vadd.f32 %v398, %v411
        %413 = vdwg.mxu0
        %414 = vmatpush.bf16.msra.mxu0 %v377
        %415 = vmatpush.bf16.msra.mxu0 %v376
        %416 = vmatpush.bf16.msra.mxu0 %v375
        %417 = vmatpush.bf16.msra.mxu0 %v374
        %418 = vmatpush.bf16.msra.mxu0 %v373
        %419 = vmatpush.bf16.msra.mxu0 %v372
        %420 = vmatpush.bf16.msra.mxu0 %v371
        %421 = vmatpush.bf16.msra.mxu0 %v370
        %422 = vmatmul.bf16.gmra.mxu0 %v288
        %v423 = vpop.f32.mrf.mxu0
        %v424 = vadd.f32 %v410, %v423
        %v425 = vpop.f32.mrf.mxu0
        %v426 = vadd.f32 %v412, %v425
        %427 = vdwg.mxu0
        %428 = vmatpush.bf16.msra.mxu0 %v385
        %429 = vmatpush.bf16.msra.mxu0 %v384
        %430 = vmatpush.bf16.msra.mxu0 %v383
        %431 = vmatpush.bf16.msra.mxu0 %v382
        %432 = vmatpush.bf16.msra.mxu0 %v381
        %433 = vmatpush.bf16.msra.mxu0 %v380
        %434 = vmatpush.bf16.msra.mxu0 %v379
        %435 = vmatpush.bf16.msra.mxu0 %v378
        %436 = vmatmul.bf16.gmra.mxu0 %v289
        %v437 = vpop.f32.mrf.mxu0
        %v438 = vadd.f32 %v424, %v437
        %v439 = vpop.f32.mrf.mxu0
        %v440 = vadd.f32 %v426, %v439
        %441 = vdwg.mxu0
        %v442 = vadd.f32 %v284, %v438
        %v443 = vadd.f32 %v285, %v440
        %vm444 = vcmask 15360
        %445 = vst.msk [vmem:[#allocation2] sm:$0xff] %vm444, %v442
        %446 = vst.msk [vmem:[#allocation2 + $0x8] sm:$0xff] %vm444, %v443
        // Predicated region
        $region37: #{tpu_custom_call.1} parent=31 // pred_check
          %p447 = pneg %p250
        $region38: #{tpu_custom_call.1} parent=31 // pred_check_branch
          %449 = sbr.rel (%p447) target = $region40
        $region39: #{tpu_custom_call.1} parent=31 // pred_region
          %v450 = vld [vmem:[#allocation2] sm:$0xff]
          %v451 = vld [vmem:[#allocation2 + $0x8] sm:$0xff]
          %v452 = vld [vmem:[%s2] sm:$0x1]
          %v454 = vperm.slane %v452, 0
          %v456 = vadd.f32 %v450, %v454
          %v457 = vadd.f32 %v451, %v454
          %460 = vrot.lane.b32.xlu0 %v456, 1
          %v461 = vpop.permute.xlu0 %460
          %462 = vrot.lane.b32.xlu0 %v457, 1
          %v463 = vpop.permute.xlu0 %462
          %v466 = vsub.f32 %v456, %v461
          %v467 = vsub.f32 %v457, %v463
          %v468 = vmax.f32 %v466, 0.0
          %v469 = vmax.f32 %v467, 0.0
          %v470 = vand.u32 2147483647, %v466
          %v471 = vand.u32 2147483647, %v467
          %v472 = vsub.f32 0.0, %v470
          %v473 = vsub.f32 0.0, %v471
          %v474 = vmul.f32 %v472, 1.442695
          %v475 = vpow.pop %v474
          %v476 = vmul.f32 %v473, 1.442695
          %v477 = vpow.pop %v476
          %v478 = vadd.f32 %v475, 1.0
          %v479 = vadd.f32 %v477, 1.0
          %v480 = vlog2.pop %v478
          %v481 = vmul.f32 %v480, 0.6931472
          %v482 = vlog2.pop %v479
          %v483 = vmul.f32 %v482, 0.6931472
          %v484 = vadd.f32 %v468, %v481
          %v485 = vadd.f32 %v469, %v483
          %v486 = vsub.f32 0.0, %v484
          %v487 = vsub.f32 0.0, %v485
          %490 = vrot.lane.b32.xlu0 %v486, 127
          %v491 = vpop.permute.xlu0 %490
          %492 = vrot.lane.b32.xlu0 %v487, 127
          %v493 = vpop.permute.xlu0 %492
          %vm496 = vcmask 7168
          %497 = vst.msk [vmem:[%s216] sm:$0xff] %vm496, %v491
          %498 = vst.msk [vmem:[%s216 + $0x8] sm:$0xff] %vm496, %v493
          %v499 = vsub.f32 %v466, %v484
          %v500 = vsub.f32 %v467, %v485
          %vm501 = vcmask 15368
          %502 = vst.msk [vmem:[%s216] sm:$0xff] %vm501, %v499
          %503 = vst.msk [vmem:[%s216 + $0x8] sm:$0xff] %vm501, %v500
        $region40: #{tpu_custom_call.1} parent=31 // pred_fallthru
          _
        %s504 = sand.u32 %s109, 1
        %s505 = sand.u32 %s109, 1
        %s506 = smul.addr %s505, 16
        %s507 = scalar_lea.vmem [#allocation3], %s506
        // Predicated region
        $region41: #{tpu_custom_call.1} parent=31 // pred_check
          %p508 = pneg %p119
        $region42: #{tpu_custom_call.1} parent=31 // pred_check_branch
          %510 = sbr.rel (%p508) target = $region44
        $region43: #{tpu_custom_call.1} parent=31 // pred_region
          %s511 = smul.u32 2, %s18
          %s512 = ssub.s32 3, %s511
          %p513 = scmp.lt.s32.totalorder %s512, 2
          %s514 = scalar_select %p513, %s512, 2
          %s515 = smul.u32 8, %s514
          %p516 = scmp.ne.s32.totalorder 0, %s515
          %s517 = smul.addr %s511, 8
          %s518 = scalar_lea.vmem %s3, %s517
          // Predicated region
          $region45: #{tpu_custom_call.1} parent=43 // pred_check
            %p519 = pneg %p516
          $region46: #{tpu_custom_call.1} parent=43 // pred_check_branch
            %521 = sbr.rel (%p519) target = $region48
          $region47: #{tpu_custom_call.1} parent=43 // pred_region
            // Predicated region
            $region49: #{tpu_custom_call.1} parent=47 // pred_check
              _
            $region50: #{tpu_custom_call.1} parent=47 // pred_check_branch
              %523 = sbr.rel (0) target = $region52
            $region51: #{tpu_custom_call.1} parent=47 // pred_region
              // Predicated region
              $region71: #{tpu_custom_call.1} parent=51 // pred_check
                _
              $region72: #{tpu_custom_call.1} parent=51 // pred_check_branch
                %575 = sbr.rel (0) target = $region74
              $region73: #{tpu_custom_call.1} parent=51 // pred_region
                %s576 = sshrl.u32 %s514, 1
                // While loop
                $region75: #{tpu_custom_call.1} parent=73 // loop_pre_header
                  _
                $region76: #{tpu_custom_call.1} parent=73 // loop_header
                  %s578 = sphi 0, %s580
                  %p579 = scmp.ge.s32.totalorder %s578, %s576
                  %s583 = sphi 0, %s592
                  %s584 = sphi %s507, %s595
                  %s585 = sphi %s518, %s596
                $region77: #{tpu_custom_call.1} parent=73 // loop_header_branch
                  %582 = sbr.rel (%p579) target = $region81
                $region78: #{tpu_custom_call.1} parent=73 // loop_body
                  %v586 = vld [vmem:[%s584] sm:$0xff]
                  %587 = vst [vmem:[%s585] sm:$0xff] %v586
                  %v588 = vld [vmem:[%s584 + $0x8] sm:$0xff]
                  %589 = vst [vmem:[%s585 + $0x8] sm:$0xff] %v588
                  %s590 = sadd.s32 1, %s583
                  %p591 = scmp.ge.s32.totalorder %s590, %s576
                  %s592 = scalar_select %p591, 0, %s590
                  %s593 = smul.u32 %s592, 16
                  %s594 = smul.u32 %s592, 16
                  %s595 = scalar_lea.vmem %s507, %s593 [#allocation3]
                  %s596 = scalar_lea.vmem %s518, %s594
                $region79: #{tpu_custom_call.1} parent=73 // loop_footer
                  %s580 = sadd.s32 %s578, 1
                $region80: #{tpu_custom_call.1} parent=73 // loop_footer_branch
                  %577 = sbr.rel target = $region76
                $region81: #{tpu_custom_call.1} parent=73 // loop_exit
                  _
                %s597 = sshrl.u32 %s514, 1
                %s598 = sand.u32 %s514, 1
                %s599 = smul.u32 %s597, 2
                %s600 = smul.u32 8, %s599
                %s601 = scalar_lea.vmem %s507, %s600 [#allocation3]
                %s602 = smul.u32 8, %s599
                %s603 = scalar_lea.vmem %s518, %s602
                // While loop
                $region82: #{tpu_custom_call.1} parent=73 // loop_pre_header
                  _
                $region83: #{tpu_custom_call.1} parent=73 // loop_header
                  %s605 = sphi 0, %s607
                  %p606 = scmp.ge.s32.totalorder %s605, %s598
                  %s610 = sphi 0, %s617
                  %s611 = sphi %s601, %s620
                  %s612 = sphi %s603, %s621
                $region84: #{tpu_custom_call.1} parent=73 // loop_header_branch
                  %609 = sbr.rel (%p606) target = $region88
                $region85: #{tpu_custom_call.1} parent=73 // loop_body
                  %v613 = vld [vmem:[%s611] sm:$0xff]
                  %614 = vst [vmem:[%s612] sm:$0xff] %v613
                  %s615 = sadd.s32 1, %s610
                  %p616 = scmp.ge.s32.totalorder %s615, %s598
                  %s617 = scalar_select %p616, 0, %s615
                  %s618 = smul.u32 %s617, 8
                  %s619 = smul.u32 %s617, 8
                  %s620 = scalar_lea.vmem %s601, %s618 [#allocation3]
                  %s621 = scalar_lea.vmem %s603, %s619
                $region86: #{tpu_custom_call.1} parent=73 // loop_footer
                  %s607 = sadd.s32 %s605, 1
                $region87: #{tpu_custom_call.1} parent=73 // loop_footer_branch
                  %604 = sbr.rel target = $region83
                $region88: #{tpu_custom_call.1} parent=73 // loop_exit
                  _
              $region74: #{tpu_custom_call.1} parent=51 // pred_fallthru
                _
              // Predicated region
              $region89: #{tpu_custom_call.1} parent=51 // pred_check
                _
              $region90: #{tpu_custom_call.1} parent=51 // pred_check_branch
                %623 = sbr.rel target = $region92
              $region91: #{tpu_custom_call.1} parent=51 // pred_region
                _
              $region92: #{tpu_custom_call.1} parent=51 // pred_fallthru
                _
            $region52: #{tpu_custom_call.1} parent=47 // pred_fallthru
              _
            // Predicated region
            $region53: #{tpu_custom_call.1} parent=47 // pred_check
              _
            $region54: #{tpu_custom_call.1} parent=47 // pred_check_branch
              %525 = sbr.rel target = $region56
            $region55: #{tpu_custom_call.1} parent=47 // pred_region
              %s527 = ssub.s32 256, 1
              %s528 = sshrl.u32 %s514, 1
              // While loop
              $region57: #{tpu_custom_call.1} parent=55 // loop_pre_header
                _
              $region58: #{tpu_custom_call.1} parent=55 // loop_header
                %s530 = sphi 0, %s532
                %p531 = scmp.ge.s32.totalorder %s530, %s528
                %s535 = sphi 0, %s544
                %s536 = sphi %s507, %s547
                %s537 = sphi %s518, %s548
              $region59: #{tpu_custom_call.1} parent=55 // loop_header_branch
                %534 = sbr.rel (%p531) target = $region63
              $region60: #{tpu_custom_call.1} parent=55 // loop_body
                %v538 = vld [vmem:[%s536] sm:%s527]
                %539 = vst [vmem:[%s537] sm:%s527] %v538
                %v540 = vld [vmem:[%s536 + $0x8] sm:%s527]
                %541 = vst [vmem:[%s537 + $0x8] sm:%s527] %v540
                %s542 = sadd.s32 1, %s535
                %p543 = scmp.ge.s32.totalorder %s542, %s528
                %s544 = scalar_select %p543, 0, %s542
                %s545 = smul.u32 %s544, 16
                %s546 = smul.u32 %s544, 16
                %s547 = scalar_lea.vmem %s507, %s545 [#allocation3]
                %s548 = scalar_lea.vmem %s518, %s546
              $region61: #{tpu_custom_call.1} parent=55 // loop_footer
                %s532 = sadd.s32 %s530, 1
              $region62: #{tpu_custom_call.1} parent=55 // loop_footer_branch
                %529 = sbr.rel target = $region58
              $region63: #{tpu_custom_call.1} parent=55 // loop_exit
                _
              %s549 = sshrl.u32 %s514, 1
              %s550 = sand.u32 %s514, 1
              %s551 = smul.u32 %s549, 2
              %s552 = smul.u32 8, %s551
              %s553 = scalar_lea.vmem %s507, %s552 [#allocation3]
              %s554 = smul.u32 8, %s551
              %s555 = scalar_lea.vmem %s518, %s554
              // While loop
              $region64: #{tpu_custom_call.1} parent=55 // loop_pre_header
                _
              $region65: #{tpu_custom_call.1} parent=55 // loop_header
                %s557 = sphi 0, %s559
                %p558 = scmp.ge.s32.totalorder %s557, %s550
                %s562 = sphi 0, %s569
                %s563 = sphi %s553, %s572
                %s564 = sphi %s555, %s573
              $region66: #{tpu_custom_call.1} parent=55 // loop_header_branch
                %561 = sbr.rel (%p558) target = $region70
              $region67: #{tpu_custom_call.1} parent=55 // loop_body
                %v565 = vld [vmem:[%s563] sm:%s527]
                %566 = vst [vmem:[%s564] sm:%s527] %v565
                %s567 = sadd.s32 1, %s562
                %p568 = scmp.ge.s32.totalorder %s567, %s550
                %s569 = scalar_select %p568, 0, %s567
                %s570 = smul.u32 %s569, 8
                %s571 = smul.u32 %s569, 8
                %s572 = scalar_lea.vmem %s553, %s570 [#allocation3]
                %s573 = scalar_lea.vmem %s555, %s571
              $region68: #{tpu_custom_call.1} parent=55 // loop_footer
                %s559 = sadd.s32 %s557, 1
              $region69: #{tpu_custom_call.1} parent=55 // loop_footer_branch
                %556 = sbr.rel target = $region65
              $region70: #{tpu_custom_call.1} parent=55 // loop_exit
                _
            $region56: #{tpu_custom_call.1} parent=47 // pred_fallthru
              _
          $region48: #{tpu_custom_call.1} parent=43 // pred_fallthru
            _
          %624 = vnop
        $region44: #{tpu_custom_call.1} parent=31 // pred_fallthru
          _
      $region32: #{tpu_custom_call.1} parent=5 // pred_fallthru
        _
      %p625 = scmp.le.s32.totalorder 2, %s9
      // Predicated region
      $region93: #{tpu_custom_call.1} parent=5 // pred_check
        %p626 = pneg %p625
      $region94: #{tpu_custom_call.1} parent=5 // pred_check_branch
        %628 = sbr.rel (%p626) target = $region96
      $region95: #{tpu_custom_call.1} parent=5 // pred_region
        %s629 = ssub.s32 %s9, 2
        // Predicated region
        $region97: #{tpu_custom_call.1} parent=95 // pred_check
          %p630 = pneg %p125
        $region98: #{tpu_custom_call.1} parent=95 // pred_check_branch
          %632 = sbr.rel (%p630) target = $region100
        $region99: #{tpu_custom_call.1} parent=95 // pred_region
          %s633 = sand.u32 %s110, 1
          %s634 = sand.u32 %s110, 1
          %s635 = smul.addr %s634, 16
          %s636 = scalar_lea.vmem [#allocation3], %s635
        $region100: #{tpu_custom_call.1} parent=95 // pred_fallthru
          _
      $region96: #{tpu_custom_call.1} parent=5 // pred_fallthru
        _
    $region6: #{tpu_custom_call.1} parent=1 // loop_footer
      %s13 = sadd.s32 1, %s9
    $region7: #{tpu_custom_call.1} parent=1 // loop_footer_branch
      %8 = sbr.rel target = $region3
    $region8: #{tpu_custom_call.1} parent=1 // loop_exit
      _

</llo_original>
